<compile_context>
chip_gen: v7x
topology: tpu7x:2x2x1
jax: 0.10.0
libtpu: 0.0.40
codegen_flags: <defaults>
</compile_context>

<pallas_src>
import numpy as np
import jax
import jax.numpy as jnp
from jax.experimental import pallas as pl
from jax.experimental.pallas import tpu as pltpu

EPS = 0.003


def critic_kernel(sa_ref,                       # [TILE_B, state_dim+action_dim] f32
                  w_sa_ref, b_sa_ref,           # block-diag(W_s1, W_a1), bias cat
                  w_s2_ref, b_s2_ref,
                  w_fc2_ref, b_fc2_ref,
                  w_fc3_ref, b_fc3_ref,
                  out_ref):                     # [TILE_B, 1] f32
    f32 = jnp.float32
    bf16 = jnp.bfloat16

    # In-kernel bf16 cast (VPU pack ops hide under MXU slack).
    sa_in = sa_ref[...].astype(bf16)            # [TILE_B, sd+ad]

    # Fused first layer: [state|action] @ diag(W_s1, W_a1) -> [s1 | a1]
    h = jnp.dot(sa_in, w_sa_ref[...], preferred_element_type=f32) + b_sa_ref[...]
    h = jnp.maximum(h, 0.0)                     # [TILE_B, 384]
    s1 = h[:, :256]                             # relu(fcs1(state))
    a1 = h[:, 256:]                             # relu(fca1(action))

    # s2 = relu(s1 @ W_s2 + b_s2)               -> [TILE_B, 128]
    s2 = jnp.dot(s1.astype(bf16), w_s2_ref[...],
                 preferred_element_type=f32) + b_s2_ref[...]
    s2 = jnp.maximum(s2, 0.0)

    # x = relu(cat(s2, a1) @ W_fc2 + b_fc2)     -> [TILE_B, 128]
    # Concat boundary is 128-lane aligned: no data movement, single K=256 dot.
    x_in = jnp.concatenate([s2.astype(bf16), a1.astype(bf16)], axis=-1)
    x = jnp.dot(x_in, w_fc2_ref[...],
                preferred_element_type=f32) + b_fc2_ref[...]
    x = jnp.maximum(x, 0.0)

    # q = x @ W_fc3.T + b_fc3 as VPU multiply + lane (XLU) reduction.
    w3 = w_fc3_ref[...].astype(f32)             # [1, 128]
    q = jnp.sum(x * w3, axis=-1, keepdims=True) + b_fc3_ref[0, 0]
    out_ref[...] = q.astype(out_ref.dtype)


def _cdiv(a, b):
    return -(-a // b)


def _round_up(x, m):
    return ((x + m - 1) // m) * m


def _pick_tile(n, desired):
    """Big tiles amortize ~0.35-0.6us/step overhead; keep >=2 steps when the
    batch allows so v7x's second TensorCore engages; never over-pad tiny
    batches; keep tiles multiple of 16 (bf16 sublane packing)."""
    if n < 64:
        return _round_up(max(n, 1), 16)
    steps = max(2, _cdiv(n, desired))
    return min(desired, _round_up(_cdiv(n, steps), 16))


def critic_forward(state, action, params, tile_b=1024):
    """Q(s, a): state [n, state_dim], action [n, action_dim] -> [n, 1]."""
    n, state_dim = state.shape
    _, action_dim = action.shape
    in_dim = state_dim + action_dim

    # One fused f32 input stream; bf16 cast happens inside the kernel.
    sa = jnp.concatenate([state.astype(jnp.float32),
                          action.astype(jnp.float32)], axis=1)

    tile_b = _pick_tile(n, int(tile_b))
    n_pad = _round_up(n, tile_b)
    if n_pad != n:
        sa = jnp.pad(sa, ((0, n_pad - n), (0, 0)))

    weight_args = (
        params["w_sa"], params["b_sa"],
        params["w_s2"], params["b_s2"],
        params["w_fc2"], params["b_fc2"],
        params["w_fc3"], params["b_fc3"],
    )

    def resident(arr):
        # Full-array block + constant index_map: DMA'd once, stays in VMEM
        # across all batch tiles (~200 KB of parameters total).
        nd = arr.ndim
        return pl.BlockSpec(arr.shape, lambda i, _nd=nd: (0,) * _nd)

    in_specs = [pl.BlockSpec((tile_b, in_dim), lambda i: (i, 0))]
    for arr in weight_args[:-1]:
        in_specs.append(resident(arr))
    # Scalar fc3 bias (1,1) lives in SMEM (no VMEM tile / DMA for it).
    in_specs.append(pl.BlockSpec(memory_space=pltpu.MemorySpace.SMEM))

    out = pl.pallas_call(
        critic_kernel,
        out_shape=jax.ShapeDtypeStruct((n_pad, 1), jnp.float32),
        grid=(n_pad // tile_b,),
        in_specs=in_specs,
        out_specs=pl.BlockSpec((tile_b, 1), lambda i: (i, 0)),
        compiler_params=pltpu.CompilerParams(
            dimension_semantics=("parallel",)),
    )(sa, *weight_args)
    return out[:n]


def fanin_init_jax(key, size, fanin=None):
    # Mirrors fanin_init: uniform(-1/sqrt(fanin), 1/sqrt(fanin)), fanin = size[0]
    fanin = fanin or size[0]
    v = 1.0 / np.sqrt(fanin)
    return jax.random.uniform(key, size, jnp.float32, minval=-v, maxval=v)


def make_params(key, state_dim, action_dim):
    """Returns (kernel_params, reference_params)."""
    keys = jax.random.split(key, 10)

    def linear_bias(k, in_features, out_features):
        # PyTorch default nn.Linear bias init: U(-1/sqrt(in), 1/sqrt(in))
        bound = 1.0 / np.sqrt(in_features)
        return jax.random.uniform(k, (1, out_features), jnp.float32,
                                  minval=-bound, maxval=bound)

    # PyTorch Linear weight shape is (out, in); fanin_init uses size[0] = out.
    w_fcs1 = fanin_init_jax(keys[0], (256, state_dim))
    w_fcs2 = fanin_init_jax(keys[1], (128, 256))
    w_fca1 = fanin_init_jax(keys[2], (128, action_dim))
    w_fc2 = fanin_init_jax(keys[3], (128, 256))
    w_fc3 = jax.random.uniform(keys[4], (1, 128), jnp.float32,
                               minval=-EPS, maxval=EPS)
    b_s1 = linear_bias(keys[5], state_dim, 256)
    b_s2 = linear_bias(keys[6], 256, 128)
    b_a1 = linear_bias(keys[7], action_dim, 128)
    b_fc2 = linear_bias(keys[8], 256, 128)
    b_fc3 = linear_bias(keys[9], 128, 1)

    # Pure-f32 reference parameters (pre-transposed to (in, out)).
    ref_params = {
        "w_s1": w_fcs1.T, "b_s1": b_s1,
        "w_s2": w_fcs2.T, "b_s2": b_s2,
        "w_a1": w_fca1.T, "b_a1": b_a1,
        "w_fc2": w_fc2.T, "b_fc2": b_fc2,
        "w_fc3": w_fc3,   "b_fc3": b_fc3,
    }

    # Kernel parameters: fused block-diagonal first layer + bf16 MXU weights.
    # NOTE: bf16 weights/activations (f32 accumulation) deviate slightly from
    # the f32 PyTorch Critic; keep weights f32 if TD-target precision demands.
    bf16 = jnp.bfloat16
    in_dim = state_dim + action_dim
    w_sa = jnp.zeros((in_dim, 256 + 128), jnp.float32)
    w_sa = w_sa.at[:state_dim, :256].set(w_fcs1.T)   # state -> s1 lanes 0:256
    w_sa = w_sa.at[state_dim:, 256:].set(w_fca1.T)   # action -> a1 lanes 256:384
    kernel_params = {
        "w_sa": w_sa.astype(bf16),                       # (sd+ad, 384)
        "b_sa": jnp.concatenate([b_s1, b_a1], axis=1),   # (1, 384) f32
        "w_s2": jnp.asarray(w_fcs2.T, bf16),             # (256, 128)
        "b_s2": b_s2,
        "w_fc2": jnp.asarray(w_fc2.T, bf16),             # (256, 128) acts on cat(s2,a1)
        "b_fc2": b_fc2,
        "w_fc3": jnp.asarray(w_fc3, bf16),               # (1, 128) row for VPU reduce
        "b_fc3": b_fc3,                                  # (1, 1) scalar -> SMEM
    }
    return kernel_params, ref_params


def reference_forward(state, action, p):
    s1 = jax.nn.relu(state @ p["w_s1"] + p["b_s1"])
    s2 = jax.nn.relu(s1 @ p["w_s2"] + p["b_s2"])
    a1 = jax.nn.relu(action @ p["w_a1"] + p["b_a1"])
    x = jnp.concatenate([s2, a1], axis=1)
    x = jax.nn.relu(x @ p["w_fc2"] + p["b_fc2"])
    return x @ p["w_fc3"].T + p["b_fc3"]


if __name__ == "__main__":
    key = jax.random.PRNGKey(0)
    k_param, k_state, k_action = jax.random.split(key, 3)

    n = 8
    state_dim = 32
    action_dim = 8

    kernel_params, ref_params = make_params(k_param, state_dim, action_dim)
    state = jax.random.normal(k_state, (n, state_dim), jnp.float32)
    action = jax.random.normal(k_action, (n, action_dim), jnp.float32)

    q = critic_forward(state, action, kernel_params)
    jax.block_until_ready(q)
    assert q.shape == (n, 1)

    q_ref = reference_forward(state, action, ref_params)
    # Tolerance relaxed vs. pure-f32 because matmul operands are bf16.
    np.testing.assert_allclose(np.asarray(q), np.asarray(q_ref),
                               rtol=2e-2, atol=2e-2)

    print("KERNEL_OK")
</pallas_src>

<mosaic_0001>
module attributes {stable_mosaic.version = 11 : i64} {
  func.func @critic_kernel(%arg0: i32, %arg1: memref<16x40xf32, #tpu.memory_space<vmem>>, %arg2: memref<40x384xbf16, #tpu.memory_space<vmem>>, %arg3: memref<1x384xf32, #tpu.memory_space<vmem>>, %arg4: memref<256x128xbf16, #tpu.memory_space<vmem>>, %arg5: memref<1x128xf32, #tpu.memory_space<vmem>>, %arg6: memref<256x128xbf16, #tpu.memory_space<vmem>>, %arg7: memref<1x128xf32, #tpu.memory_space<vmem>>, %arg8: memref<1x128xbf16, #tpu.memory_space<vmem>>, %arg9: memref<1x1xf32, #tpu.memory_space<smem>>, %arg10: memref<16x1xf32, #tpu.memory_space<vmem>>) attributes {dimension_semantics = [#tpu.dimension_semantics<parallel>], iteration_bounds = array<i64: 1>, scalar_prefetch = 0 : i64, scratch_operands = 0 : i64, tpu.core_type = #tpu.core_type<tc>, window_params = [{transform_indices = @transform_0, window_bounds = array<i64: 16, 40>}, {pipeline_mode = #tpu.pipeline_mode<synchronous>, transform_indices = @transform_1, window_bounds = array<i64: 40, 384>}, {pipeline_mode = #tpu.pipeline_mode<synchronous>, transform_indices = @transform_2, window_bounds = array<i64: 1, 384>}, {pipeline_mode = #tpu.pipeline_mode<synchronous>, transform_indices = @transform_3, window_bounds = array<i64: 256, 128>}, {pipeline_mode = #tpu.pipeline_mode<synchronous>, transform_indices = @transform_4, window_bounds = array<i64: 1, 128>}, {pipeline_mode = #tpu.pipeline_mode<synchronous>, transform_indices = @transform_5, window_bounds = array<i64: 256, 128>}, {pipeline_mode = #tpu.pipeline_mode<synchronous>, transform_indices = @transform_6, window_bounds = array<i64: 1, 128>}, {pipeline_mode = #tpu.pipeline_mode<synchronous>, transform_indices = @transform_7, window_bounds = array<i64: 1, 128>}, {transform_indices = @transform_8, window_bounds = array<i64: 1, 1>}, {transform_indices = @transform_9, window_bounds = array<i64: 16, 1>}]} {
    %c0 = arith.constant 0 : index
    %c0_0 = arith.constant 0 : index
    %0 = vector.load %arg1[%c0, %c0_0] : memref<16x40xf32, #tpu.memory_space<vmem>>, vector<16x40xf32>
    %1 = arith.truncf %0 : vector<16x40xf32> to vector<16x40xbf16>
    %c0_1 = arith.constant 0 : index
    %c0_2 = arith.constant 0 : index
    %2 = vector.load %arg2[%c0_1, %c0_2] : memref<40x384xbf16, #tpu.memory_space<vmem>>, vector<40x384xbf16>
    %cst = arith.constant dense<0.000000e+00> : vector<16x384xf32>
    %3 = tpu.matmul %1, %2, %cst {dimension_numbers = #tpu.dot_dimension_numbers<[1], [0], [0], [1], [0, 0, 1, 1], [], []>} : vector<16x40xbf16>, vector<40x384xbf16>, vector<16x384xf32> -> vector<16x384xf32>
    %c0_3 = arith.constant 0 : index
    %c0_4 = arith.constant 0 : index
    %4 = vector.load %arg3[%c0_3, %c0_4] : memref<1x384xf32, #tpu.memory_space<vmem>>, vector<1x384xf32>
    %5 = vector.broadcast %4 : vector<1x384xf32> to vector<16x384xf32>
    %6 = arith.addf %3, %5 : vector<16x384xf32>
    %cst_5 = arith.constant 0.000000e+00 : f32
    %7 = vector.broadcast %cst_5 : f32 to vector<16x384xf32>
    %8 = arith.maximumf %6, %7 : vector<16x384xf32>
    %9 = vector.extract_strided_slice %8 {offsets = [0, 0], sizes = [16, 256], strides = [1, 1]} : vector<16x384xf32> to vector<16x256xf32>
    %10 = vector.extract_strided_slice %8 {offsets = [0, 256], sizes = [16, 128], strides = [1, 1]} : vector<16x384xf32> to vector<16x128xf32>
    %11 = arith.truncf %9 : vector<16x256xf32> to vector<16x256xbf16>
    %c0_6 = arith.constant 0 : index
    %c0_7 = arith.constant 0 : index
    %12 = vector.load %arg4[%c0_6, %c0_7] : memref<256x128xbf16, #tpu.memory_space<vmem>>, vector<256x128xbf16>
    %cst_8 = arith.constant dense<0.000000e+00> : vector<16x128xf32>
    %13 = tpu.matmul %11, %12, %cst_8 {dimension_numbers = #tpu.dot_dimension_numbers<[1], [0], [0], [1], [0, 0, 1, 1], [], []>} : vector<16x256xbf16>, vector<256x128xbf16>, vector<16x128xf32> -> vector<16x128xf32>
    %c0_9 = arith.constant 0 : index
    %c0_10 = arith.constant 0 : index
    %14 = vector.load %arg5[%c0_9, %c0_10] : memref<1x128xf32, #tpu.memory_space<vmem>>, vector<1x128xf32>
    %15 = vector.broadcast %14 : vector<1x128xf32> to vector<16x128xf32>
    %16 = arith.addf %13, %15 : vector<16x128xf32>
    %cst_11 = arith.constant 0.000000e+00 : f32
    %17 = vector.broadcast %cst_11 : f32 to vector<16x128xf32>
    %18 = arith.maximumf %16, %17 : vector<16x128xf32>
    %19 = arith.truncf %18 : vector<16x128xf32> to vector<16x128xbf16>
    %20 = arith.truncf %10 : vector<16x128xf32> to vector<16x128xbf16>
    %21 = tpu.concatenate %19, %20 in 1 : vector<16x128xbf16>, vector<16x128xbf16> -> vector<16x256xbf16>
    %c0_12 = arith.constant 0 : index
    %c0_13 = arith.constant 0 : index
    %22 = vector.load %arg6[%c0_12, %c0_13] : memref<256x128xbf16, #tpu.memory_space<vmem>>, vector<256x128xbf16>
    %cst_14 = arith.constant dense<0.000000e+00> : vector<16x128xf32>
    %23 = tpu.matmul %21, %22, %cst_14 {dimension_numbers = #tpu.dot_dimension_numbers<[1], [0], [0], [1], [0, 0, 1, 1], [], []>} : vector<16x256xbf16>, vector<256x128xbf16>, vector<16x128xf32> -> vector<16x128xf32>
    %c0_15 = arith.constant 0 : index
    %c0_16 = arith.constant 0 : index
    %24 = vector.load %arg7[%c0_15, %c0_16] : memref<1x128xf32, #tpu.memory_space<vmem>>, vector<1x128xf32>
    %25 = vector.broadcast %24 : vector<1x128xf32> to vector<16x128xf32>
    %26 = arith.addf %23, %25 : vector<16x128xf32>
    %cst_17 = arith.constant 0.000000e+00 : f32
    %27 = vector.broadcast %cst_17 : f32 to vector<16x128xf32>
    %28 = arith.maximumf %26, %27 : vector<16x128xf32>
    %c0_18 = arith.constant 0 : index
    %c0_19 = arith.constant 0 : index
    %29 = vector.load %arg8[%c0_18, %c0_19] : memref<1x128xbf16, #tpu.memory_space<vmem>>, vector<1x128xbf16>
    %30 = arith.extf %29 : vector<1x128xbf16> to vector<1x128xf32>
    %31 = vector.broadcast %30 : vector<1x128xf32> to vector<16x128xf32>
    %32 = arith.mulf %28, %31 : vector<16x128xf32>
    %cst_20 = arith.constant dense<0.000000e+00> : vector<16xf32>
    %33 = vector.multi_reduction <add>, %32, %cst_20 [1] : vector<16x128xf32> to vector<16xf32>
    %34 = vector.shape_cast %33 : vector<16xf32> to vector<16x1xf32>
    %c0_21 = arith.constant 0 : index
    %c0_22 = arith.constant 0 : index
    %35 = memref.load %arg9[%c0_21, %c0_22] : memref<1x1xf32, #tpu.memory_space<smem>>
    %36 = vector.broadcast %35 : f32 to vector<16x1xf32>
    %37 = arith.addf %34, %36 : vector<16x1xf32>
    %c0_23 = arith.constant 0 : index
    %c0_24 = arith.constant 0 : index
    %38 = vector.load %arg10[%c0_23, %c0_24] : memref<16x1xf32, #tpu.memory_space<vmem>>, vector<16x1xf32>
    tpu.vector_store %arg10[%c0_23, %c0_24], %37 {strides = array<i32>} : memref<16x1xf32, #tpu.memory_space<vmem>>, vector<16x1xf32>,
    return
  }
  func.func @transform_0(%arg0: i32) -> (i32, i32) {
    %c0_i32 = arith.constant 0 : i32
    %c0_i32_0 = arith.constant 0 : i32
    return %arg0, %c0_i32 : i32, i32
  }
  func.func @transform_1(%arg0: i32) -> (i32, i32) {
    %c0_i32 = arith.constant 0 : i32
    %c0_i32_0 = arith.constant 0 : i32
    %c0_i32_1 = arith.constant 0 : i32
    return %c0_i32, %c0_i32_0 : i32, i32
  }
  func.func @transform_2(%arg0: i32) -> (i32, i32) {
    %c0_i32 = arith.constant 0 : i32
    %c0_i32_0 = arith.constant 0 : i32
    %c0_i32_1 = arith.constant 0 : i32
    return %c0_i32, %c0_i32_0 : i32, i32
  }
  func.func @transform_3(%arg0: i32) -> (i32, i32) {
    %c0_i32 = arith.constant 0 : i32
    %c0_i32_0 = arith.constant 0 : i32
    %c0_i32_1 = arith.constant 0 : i32
    return %c0_i32, %c0_i32_0 : i32, i32
  }
  func.func @transform_4(%arg0: i32) -> (i32, i32) {
    %c0_i32 = arith.constant 0 : i32
    %c0_i32_0 = arith.constant 0 : i32
    %c0_i32_1 = arith.constant 0 : i32
    return %c0_i32, %c0_i32_0 : i32, i32
  }
  func.func @transform_5(%arg0: i32) -> (i32, i32) {
    %c0_i32 = arith.constant 0 : i32
    %c0_i32_0 = arith.constant 0 : i32
    %c0_i32_1 = arith.constant 0 : i32
    return %c0_i32, %c0_i32_0 : i32, i32
  }
  func.func @transform_6(%arg0: i32) -> (i32, i32) {
    %c0_i32 = arith.constant 0 : i32
    %c0_i32_0 = arith.constant 0 : i32
    %c0_i32_1 = arith.constant 0 : i32
    return %c0_i32, %c0_i32_0 : i32, i32
  }
  func.func @transform_7(%arg0: i32) -> (i32, i32) {
    %c0_i32 = arith.constant 0 : i32
    %c0_i32_0 = arith.constant 0 : i32
    %c0_i32_1 = arith.constant 0 : i32
    return %c0_i32, %c0_i32_0 : i32, i32
  }
  func.func @transform_8(%arg0: i32) -> (i32, i32) {
    %c0_i32 = arith.constant 0 : i32
    %c0_i32_0 = arith.constant 0 : i32
    %c0_i32_1 = arith.constant 0 : i32
    return %c0_i32, %c0_i32_0 : i32, i32
  }
  func.func @transform_9(%arg0: i32) -> (i32, i32) {
    %c0_i32 = arith.constant 0 : i32
    %c0_i32_0 = arith.constant 0 : i32
    return %arg0, %c0_i32 : i32, i32
  }
}

</mosaic_0001>

<llo_original>
// kernel: tpu_custom_call.1
$region0: #{tpu_custom_call.1}
  #allocation0 [shape = 'u32[]', space=smem, size = 0x4, offset = 0x4, fixed_abs, tag = 'smem constant byte address 0x4 - core index']
  #allocation1 [shape = 'u32[144,128]{1,0:T(1,128)}', space=vmem, size = 0x12000, scoped, tag = 'internal scratch']
  #allocation2 [shape = 'f32[1,1]{1,0:T(1,128)S(6)}', space=smem, size = 0x200, scoped, tag = 'scoped memory for tpu_custom_call.1']
  %s0 = inlined_call_operand.hbm [shape: f32[16,40], index: 0, kind: input, shape index: {}]
  %s1 = inlined_call_operand.hbm [shape: bf16[40,384], index: 1, kind: input, shape index: {}]
  %s2 = inlined_call_operand.vmem [shape: f32[1,384], index: 2, kind: input, shape index: {}]
  %s3 = inlined_call_operand.hbm [shape: bf16[256,128], index: 3, kind: input, shape index: {}]
  %s4 = inlined_call_operand.vmem [shape: f32[1,128], index: 4, kind: input, shape index: {}]
  %s5 = inlined_call_operand.hbm [shape: bf16[256,128], index: 5, kind: input, shape index: {}]
  %s6 = inlined_call_operand.vmem [shape: f32[1,128], index: 6, kind: input, shape index: {}]
  %s7 = inlined_call_operand.vmem [shape: bf16[1,128], index: 7, kind: input, shape index: {}]
  %s8 = inlined_call_operand.<no memory space> [shape: f32[1,1], index: 8, kind: input, shape index: {}]
  %s9 = inlined_call_operand.vmem [shape: f32[16,1], index: 9, kind: output, shape index: {}]
  %s10 = sld [smem:[#allocation0]]
  $region62: #{tpu_custom_call.1} parent=0
    _
  %s12 = ssub.s32 1, %s10
  %s13 = scalar_select 0, %s12, %s10
  %14 = sst [smem:[#allocation2]] %s8
  $region1: #{tpu_custom_call.1} parent=0
    #allocation3 [shape = 'u8[8192]{0}', space=vmem, size = 0x2000, scoped, tag = 'input window, operand 0, single buffered']
    #allocation4 [shape = 's32[1]{0}', space=sflag, size = 0x4, scoped, tag = 'scoped memory for tpu_custom_call.1']
    #allocation5 [shape = 'u8[30720]{0}', space=vmem, size = 0x7800, scoped, tag = 'input window, operand 1, single buffered']
    #allocation6 [shape = 's32[1]{0}', space=sflag, size = 0x4, scoped, tag = 'scoped memory for tpu_custom_call.1']
    #allocation7 [shape = 'u8[65536]{0}', space=vmem, size = 0x10000, scoped, tag = 'input window, operand 3, single buffered']
    #allocation8 [shape = 'u8[65536]{0}', space=vmem, size = 0x10000, scoped, tag = 'input window, operand 5, single buffered']
    #allocation9 [shape = 's32[1]{0}', space=sflag, size = 0x4, scoped, tag = 'scoped memory for tpu_custom_call.1']
    %15 = vsyncpa [#allocation4], 0
    %16 = vsyncpa [#allocation6], 0
    %17 = vsyncpa [#allocation9], 0
    // Predicated region
    $region2: #{tpu_custom_call.1} parent=1 // pred_check
      _
    $region3: #{tpu_custom_call.1} parent=1 // pred_check_branch
      %19 = sbr.rel (0) target = $region5
    $region4: #{tpu_custom_call.1} parent=1 // pred_region
      %s21 = ssub.s32 256, 256
      %22 = vsyncadd [#allocation4], %s21
      %s23 = sshll.u32 [#allocation3], 4
      %s24 = int_to_ptr.vmem [resolvable:$true] %s23
      %29 = dma.hbm_to_vmem [thread:$0]  %s0, 256, %s24, [#allocation4], 128, 128, 8
    $region5: #{tpu_custom_call.1} parent=1 // pred_fallthru
      _
    // Predicated region
    $region6: #{tpu_custom_call.1} parent=1 // pred_check
      _
    $region7: #{tpu_custom_call.1} parent=1 // pred_check_branch
      %31 = sbr.rel (0) target = $region9
    $region8: #{tpu_custom_call.1} parent=1 // pred_region
      %s33 = ssub.s32 960, 960
      %34 = vsyncadd [#allocation6], %s33
      %s35 = sshll.u32 [#allocation5], 4
      %s36 = int_to_ptr.vmem [resolvable:$true] %s35
      %41 = dma.hbm_to_vmem [thread:$0]  %s1, 960, %s36, [#allocation6], 192, 192, 12
    $region9: #{tpu_custom_call.1} parent=1 // pred_fallthru
      _
    // Predicated region
    $region10: #{tpu_custom_call.1} parent=1 // pred_check
      _
    $region11: #{tpu_custom_call.1} parent=1 // pred_check_branch
      %43 = sbr.rel (0) target = $region13
    $region12: #{tpu_custom_call.1} parent=1 // pred_region
      _
    $region13: #{tpu_custom_call.1} parent=1 // pred_fallthru
      _
    // Predicated region
    $region14: #{tpu_custom_call.1} parent=1 // pred_check
      _
    $region15: #{tpu_custom_call.1} parent=1 // pred_check_branch
      %45 = sbr.rel (0) target = $region17
    $region16: #{tpu_custom_call.1} parent=1 // pred_region
      %s47 = ssub.s32 2048, 2048
      %48 = vsyncadd [#allocation6], %s47
      %s49 = sshll.u32 [#allocation7], 4
      %s50 = int_to_ptr.vmem [resolvable:$true] %s49
      %55 = dma.hbm_to_vmem [thread:$0]  %s3, 2048, %s50, [#allocation6], 64, 64, 4
    $region17: #{tpu_custom_call.1} parent=1 // pred_fallthru
      _
    // Predicated region
    $region18: #{tpu_custom_call.1} parent=1 // pred_check
      _
    $region19: #{tpu_custom_call.1} parent=1 // pred_check_branch
      %57 = sbr.rel (0) target = $region21
    $region20: #{tpu_custom_call.1} parent=1 // pred_region
      _
    $region21: #{tpu_custom_call.1} parent=1 // pred_fallthru
      _
    // Predicated region
    $region22: #{tpu_custom_call.1} parent=1 // pred_check
      _
    $region23: #{tpu_custom_call.1} parent=1 // pred_check_branch
      %59 = sbr.rel (0) target = $region25
    $region24: #{tpu_custom_call.1} parent=1 // pred_region
      %s61 = ssub.s32 2048, 2048
      %62 = vsyncadd [#allocation9], %s61
      %s63 = sshll.u32 [#allocation8], 4
      %s64 = int_to_ptr.vmem [resolvable:$true] %s63
      %69 = dma.hbm_to_vmem [thread:$0]  %s5, 2048, %s64, [#allocation9], 64, 64, 4
    $region25: #{tpu_custom_call.1} parent=1 // pred_fallthru
      _
    // Predicated region
    $region26: #{tpu_custom_call.1} parent=1 // pred_check
      _
    $region27: #{tpu_custom_call.1} parent=1 // pred_check_branch
      %71 = sbr.rel (0) target = $region29
    $region28: #{tpu_custom_call.1} parent=1 // pred_region
      _
    $region29: #{tpu_custom_call.1} parent=1 // pred_fallthru
      _
    // Predicated region
    $region30: #{tpu_custom_call.1} parent=1 // pred_check
      _
    $region31: #{tpu_custom_call.1} parent=1 // pred_check_branch
      %73 = sbr.rel (0) target = $region33
    $region32: #{tpu_custom_call.1} parent=1 // pred_region
      _
    $region33: #{tpu_custom_call.1} parent=1 // pred_fallthru
      _
    // Predicated region
    $region34: #{tpu_custom_call.1} parent=1 // pred_check
      _
    $region35: #{tpu_custom_call.1} parent=1 // pred_check_branch
      %75 = sbr.rel (0) target = $region37
    $region36: #{tpu_custom_call.1} parent=1 // pred_region
      _
    $region37: #{tpu_custom_call.1} parent=1 // pred_fallthru
      _
    // Predicated region
    $region38: #{tpu_custom_call.1} parent=1 // pred_check
      _
    $region39: #{tpu_custom_call.1} parent=1 // pred_check_branch
      %77 = sbr.rel (0) target = $region41
    $region40: #{tpu_custom_call.1} parent=1 // pred_region
      %78 = dma.done [#allocation4], 256
    $region41: #{tpu_custom_call.1} parent=1 // pred_fallthru
      _
    // Predicated region
    $region42: #{tpu_custom_call.1} parent=1 // pred_check
      _
    $region43: #{tpu_custom_call.1} parent=1 // pred_check_branch
      %80 = sbr.rel (0) target = $region45
    $region44: #{tpu_custom_call.1} parent=1 // pred_region
      %81 = dma.done [#allocation6], 960
    $region45: #{tpu_custom_call.1} parent=1 // pred_fallthru
      _
    // Predicated region
    $region46: #{tpu_custom_call.1} parent=1 // pred_check
      _
    $region47: #{tpu_custom_call.1} parent=1 // pred_check_branch
      %83 = sbr.rel (0) target = $region49
    $region48: #{tpu_custom_call.1} parent=1 // pred_region
      %84 = dma.done [#allocation6], 2048
    $region49: #{tpu_custom_call.1} parent=1 // pred_fallthru
      _
    // Predicated region
    $region50: #{tpu_custom_call.1} parent=1 // pred_check
      _
    $region51: #{tpu_custom_call.1} parent=1 // pred_check_branch
      %86 = sbr.rel (0) target = $region53
    $region52: #{tpu_custom_call.1} parent=1 // pred_region
      %87 = dma.done [#allocation9], 2048
    $region53: #{tpu_custom_call.1} parent=1 // pred_fallthru
      _
    %v89 = vld [vmem:[#allocation3] sm:$0xff]
    %v90 = vld [vmem:[#allocation3 + $0x8] sm:$0xff]
    %v91 = vpack.c.bf16 %v90, %v89
    %v92 = vld [vmem:[#allocation5] sm:$0xff]
    %v93 = vld [vmem:[#allocation5 + $0x8] sm:$0xf]
    %v94 = vld [vmem:[#allocation5 + $0xc] sm:$0xff]
    %v95 = vld [vmem:[#allocation5 + $0x14] sm:$0xf]
    %v96 = vld [vmem:[#allocation5 + $0x18] sm:$0xff]
    %v97 = vld [vmem:[#allocation5 + $0x20] sm:$0xf]
    %v98 = vld [vmem:[#allocation5 + $0x24] sm:$0xff]
    %v99 = vld [vmem:[#allocation5 + $0x2c] sm:$0xf]
    %v100 = vld [vmem:[#allocation5 + $0x30] sm:$0xff]
    %v101 = vld [vmem:[#allocation5 + $0x38] sm:$0xf]
    %v102 = vld [vmem:[%s2] sm:$0x7]
    %v104 = vlaneseq
    %v105 = vshrl.u32 %v104, 7
    %v106 = vsub.s32 0, %v105
    %v107 = vrot.slane %v102, %v106
    %v108 = vlaneseq
    %v109 = vshrl.u32 %v108, 7
    %v110 = vsub.s32 1, %v109
    %v111 = vrot.slane %v102, %v110
    %v112 = vlaneseq
    %v113 = vshrl.u32 %v112, 7
    %v114 = vsub.s32 2, %v113
    %v115 = vrot.slane %v102, %v114
    %v129 = vunpack.c.l.b16 %v92
    %v130 = vunpack.c.h.b16 %v92
    %v131 = vunpack.c.l.b16 %v93
    %v132 = vunpack.c.l.b16 %v94
    %v133 = vunpack.c.h.b16 %v94
    %v134 = vunpack.c.l.b16 %v95
    %v135 = vunpack.c.l.b16 %v96
    %v136 = vunpack.c.h.b16 %v96
    %v137 = vunpack.c.l.b16 %v97
    %v138 = vunpack.c.l.b16 %v98
    %v139 = vunpack.c.h.b16 %v98
    %v140 = vunpack.c.l.b16 %v99
    %v141 = vunpack.c.l.b16 %v100
    %v142 = vunpack.c.h.b16 %v100
    %v143 = vunpack.c.l.b16 %v101
    %v144 = vpack.c.b16 %v132, %v129
    %v145 = vpack.c.b16 %v133, %v130
    %v146 = vpack.c.b16 %v134, %v131
    %v147 = vpack.c.b16 %v138, %v135
    %v148 = vpack.c.b16 %v139, %v136
    %v149 = vpack.c.b16 %v140, %v137
    %v150 = vpack.c.b16 %v141, %v141
    %v151 = vpack.c.b16 %v142, %v142
    %v152 = vpack.c.b16 %v143, %v143
    %vm159 = vcmask 326656
    %v161 = vsel %vm159, %v91, 0
    %vm163 = vcmask 1043456
    %v165 = vsel %vm163, %v150, 0
    %v168 = vsel %vm163, %v151, 0
    %v171 = vsel %vm163, %v152, 0
    %173 = vmatprep.subr.bf16.mxu0 %v145
    %174 = vmatpush1.bf16.msra.mxu0 %v144
    %175 = vmatprep.subr.bf16.mxu0 %v148
    %176 = vmatpush1.bf16.msra.mxu0 %v147
    %177 = vmatprep.subr.bf16.mxu0 %v168
    %178 = vmatpush1.bf16.msra.mxu0 %v165
    %179 = vmatprep.subr.bf16.mxu0 0
    %180 = vmatpush1.bf16.msra.mxu0 0
    %181 = vmatprep.subr.bf16.mxu0 0
    %182 = vmatpush1.bf16.msra.mxu0 0
    %183 = vmatprep.subr.bf16.mxu0 0
    %184 = vmatpush1.bf16.msra.mxu0 0
    %185 = vmatprep.subr.bf16.mxu0 0
    %186 = vmatpush1.bf16.msra.mxu0 0
    %187 = vmatprep.subr.bf16.mxu0 0
    %188 = vmatpush1.bf16.msra.mxu0 0
    %189 = vmatprep.subr.bf16.mxu0 0
    %190 = vmatpush1.bf16.msra.mxu0 0
    %191 = vmatprep.subr.bf16.mxu0 0
    %192 = vmatpush1.bf16.msra.mxu0 0
    %193 = vmatprep.subr.bf16.mxu0 0
    %194 = vmatpush1.bf16.msra.mxu0 0
    %195 = vmatprep.subr.bf16.mxu0 0
    %196 = vmatpush1.bf16.msra.mxu0 0
    %197 = vmatprep.subr.bf16.mxu0 0
    %198 = vmatpush1.bf16.msra.mxu0 0
    %199 = vmatprep.subr.bf16.mxu0 0
    %200 = vmatpush1.bf16.msra.mxu0 0
    %201 = vmatprep.subr.bf16.mxu0 0
    %202 = vmatpush1.bf16.msra.mxu0 0
    %203 = vmatprep.subr.bf16.mxu0 0
    %204 = vmatpush1.bf16.msra.mxu0 0
    %205 = vmatprep.mubr.bf16.mxu0 0
    %206 = vmatmul.mubr.bf16.gmra.mrb[0].mxu0 %v161
    %v207 = vpop.f32.mrb[0].mxu0
    %v208 = vadd.f32 %v107, %v207
    %v209 = vpop.f32.mrb[0].mxu0
    %v210 = vadd.f32 %v111, %v209
    %v211 = vpop.f32.mrb[0].mxu0
    %v212 = vadd.f32 %v107, %v211
    %v213 = vpop.f32.mrb[0].mxu0
    %v214 = vadd.f32 %v111, %v213
    %215 = vdwg.mxu0
    %216 = vmatprep.subr.bf16.mxu0 0
    %217 = vmatpush1.bf16.msra.mxu0 %v146
    %218 = vmatprep.subr.bf16.mxu0 0
    %219 = vmatpush1.bf16.msra.mxu0 %v149
    %220 = vmatprep.subr.bf16.mxu0 0
    %221 = vmatpush1.bf16.msra.mxu0 %v171
    %222 = vmatprep.subr.bf16.mxu0 0
    %223 = vmatpush1.bf16.msra.mxu0 0
    %224 = vmatprep.subr.bf16.mxu0 0
    %225 = vmatpush1.bf16.msra.mxu0 0
    %226 = vmatprep.subr.bf16.mxu0 0
    %227 = vmatpush1.bf16.msra.mxu0 0
    %228 = vmatprep.subr.bf16.mxu0 0
    %229 = vmatpush1.bf16.msra.mxu0 0
    %230 = vmatprep.subr.bf16.mxu0 0
    %231 = vmatpush1.bf16.msra.mxu0 0
    %232 = vmatprep.subr.bf16.mxu0 0
    %233 = vmatpush1.bf16.msra.mxu0 0
    %234 = vmatprep.subr.bf16.mxu0 0
    %235 = vmatpush1.bf16.msra.mxu0 0
    %236 = vmatprep.subr.bf16.mxu0 0
    %237 = vmatpush1.bf16.msra.mxu0 0
    %238 = vmatprep.subr.bf16.mxu0 0
    %239 = vmatpush1.bf16.msra.mxu0 0
    %240 = vmatprep.subr.bf16.mxu0 0
    %241 = vmatpush1.bf16.msra.mxu0 0
    %242 = vmatprep.subr.bf16.mxu0 0
    %243 = vmatpush1.bf16.msra.mxu0 0
    %244 = vmatprep.subr.bf16.mxu0 0
    %245 = vmatpush1.bf16.msra.mxu0 0
    %246 = vmatprep.subr.bf16.mxu0 0
    %247 = vmatpush1.bf16.msra.mxu0 0
    %248 = vmatprep.mubr.bf16.mxu0 0
    %249 = vmatmul.mubr.bf16.gmra.mrb[0].mxu0 %v161
    %v250 = vpop.f32.mrb[0].mxu0
    %v251 = vadd.f32 %v115, %v250
    %v252 = vpop.f32.mrb[0].mxu0
    %v253 = vpop.f32.mrb[0].mxu0
    %v254 = vadd.f32 %v115, %v253
    %v255 = vpop.f32.mrb[0].mxu0
    %256 = vdwg.mxu0
    %v257 = vmax.f32 %v208, 0.0
    %v258 = vmax.f32 %v210, 0.0
    %v259 = vmax.f32 %v251, 0.0
    %v260 = vmax.f32 %v212, 0.0
    %v261 = vmax.f32 %v214, 0.0
    %v262 = vmax.f32 %v254, 0.0
    %v263 = vpack.c.bf16 %v260, %v257
    %v264 = vpack.c.bf16 %v261, %v258
    %v265 = vld [vmem:[#allocation7] sm:$0xf]
    %v266 = vld [vmem:[#allocation7 + $0x4] sm:$0xf]
    %v267 = vld [vmem:[#allocation7 + $0x8] sm:$0xf]
    %v268 = vld [vmem:[#allocation7 + $0xc] sm:$0xf]
    %v269 = vld [vmem:[#allocation7 + $0x10] sm:$0xf]
    %v270 = vld [vmem:[#allocation7 + $0x14] sm:$0xf]
    %v271 = vld [vmem:[#allocation7 + $0x18] sm:$0xf]
    %v272 = vld [vmem:[#allocation7 + $0x1c] sm:$0xf]
    %v273 = vld [vmem:[#allocation7 + $0x20] sm:$0xf]
    %v274 = vld [vmem:[#allocation7 + $0x24] sm:$0xf]
    %v275 = vld [vmem:[#allocation7 + $0x28] sm:$0xf]
    %v276 = vld [vmem:[#allocation7 + $0x2c] sm:$0xf]
    %v277 = vld [vmem:[#allocation7 + $0x30] sm:$0xf]
    %v278 = vld [vmem:[#allocation7 + $0x34] sm:$0xf]
    %v279 = vld [vmem:[#allocation7 + $0x38] sm:$0xf]
    %v280 = vld [vmem:[#allocation7 + $0x3c] sm:$0xf]
    %v281 = vld [vmem:[#allocation7 + $0x40] sm:$0xf]
    %v282 = vld [vmem:[#allocation7 + $0x44] sm:$0xf]
    %v283 = vld [vmem:[#allocation7 + $0x48] sm:$0xf]
    %v284 = vld [vmem:[#allocation7 + $0x4c] sm:$0xf]
    %v285 = vld [vmem:[#allocation7 + $0x50] sm:$0xf]
    %v286 = vld [vmem:[#allocation7 + $0x54] sm:$0xf]
    %v287 = vld [vmem:[#allocation7 + $0x58] sm:$0xf]
    %v288 = vld [vmem:[#allocation7 + $0x5c] sm:$0xf]
    %v289 = vld [vmem:[#allocation7 + $0x60] sm:$0xf]
    %v290 = vld [vmem:[#allocation7 + $0x64] sm:$0xf]
    %v291 = vld [vmem:[#allocation7 + $0x68] sm:$0xf]
    %v292 = vld [vmem:[#allocation7 + $0x6c] sm:$0xf]
    %v293 = vld [vmem:[#allocation7 + $0x70] sm:$0xf]
    %v294 = vld [vmem:[#allocation7 + $0x74] sm:$0xf]
    %v295 = vld [vmem:[#allocation7 + $0x78] sm:$0xf]
    %v296 = vld [vmem:[#allocation7 + $0x7c] sm:$0xf]
    %v297 = vld [vmem:[%s4] sm:$0x1]
    %v299 = vlaneseq
    %v300 = vshrl.u32 %v299, 7
    %v301 = vsub.s32 0, %v300
    %v302 = vrot.slane %v297, %v301
    %v336 = vunpack.c.l.b16 %v265
    %v337 = vunpack.c.l.b16 %v266
    %v338 = vunpack.c.l.b16 %v267
    %v339 = vunpack.c.l.b16 %v268
    %v340 = vunpack.c.l.b16 %v269
    %v341 = vunpack.c.l.b16 %v270
    %v342 = vunpack.c.l.b16 %v271
    %v343 = vunpack.c.l.b16 %v272
    %v344 = vunpack.c.l.b16 %v273
    %v345 = vunpack.c.l.b16 %v274
    %v346 = vunpack.c.l.b16 %v275
    %v347 = vunpack.c.l.b16 %v276
    %v348 = vunpack.c.l.b16 %v277
    %v349 = vunpack.c.l.b16 %v278
    %v350 = vunpack.c.l.b16 %v279
    %v351 = vunpack.c.l.b16 %v280
    %v352 = vunpack.c.l.b16 %v281
    %v353 = vunpack.c.l.b16 %v282
    %v354 = vunpack.c.l.b16 %v283
    %v355 = vunpack.c.l.b16 %v284
    %v356 = vunpack.c.l.b16 %v285
    %v357 = vunpack.c.l.b16 %v286
    %v358 = vunpack.c.l.b16 %v287
    %v359 = vunpack.c.l.b16 %v288
    %v360 = vunpack.c.l.b16 %v289
    %v361 = vunpack.c.l.b16 %v290
    %v362 = vunpack.c.l.b16 %v291
    %v363 = vunpack.c.l.b16 %v292
    %v364 = vunpack.c.l.b16 %v293
    %v365 = vunpack.c.l.b16 %v294
    %v366 = vunpack.c.l.b16 %v295
    %v367 = vunpack.c.l.b16 %v296
    %v368 = vpack.c.b16 %v337, %v336
    %v369 = vpack.c.b16 %v339, %v338
    %v370 = vpack.c.b16 %v341, %v340
    %v371 = vpack.c.b16 %v343, %v342
    %v372 = vpack.c.b16 %v345, %v344
    %v373 = vpack.c.b16 %v347, %v346
    %v374 = vpack.c.b16 %v349, %v348
    %v375 = vpack.c.b16 %v351, %v350
    %v376 = vpack.c.b16 %v353, %v352
    %v377 = vpack.c.b16 %v355, %v354
    %v378 = vpack.c.b16 %v357, %v356
    %v379 = vpack.c.b16 %v359, %v358
    %v380 = vpack.c.b16 %v361, %v360
    %v381 = vpack.c.b16 %v363, %v362
    %v382 = vpack.c.b16 %v365, %v364
    %v383 = vpack.c.b16 %v367, %v366
    %400 = vmatprep.subr.bf16.mxu0 0
    %401 = vmatpush1.bf16.msra.mxu0 %v368
    %402 = vmatprep.subr.bf16.mxu0 0
    %403 = vmatpush1.bf16.msra.mxu0 %v369
    %404 = vmatprep.subr.bf16.mxu0 0
    %405 = vmatpush1.bf16.msra.mxu0 %v370
    %406 = vmatprep.subr.bf16.mxu0 0
    %407 = vmatpush1.bf16.msra.mxu0 %v371
    %408 = vmatprep.subr.bf16.mxu0 0
    %409 = vmatpush1.bf16.msra.mxu0 %v372
    %410 = vmatprep.subr.bf16.mxu0 0
    %411 = vmatpush1.bf16.msra.mxu0 %v373
    %412 = vmatprep.subr.bf16.mxu0 0
    %413 = vmatpush1.bf16.msra.mxu0 %v374
    %414 = vmatprep.subr.bf16.mxu0 0
    %415 = vmatpush1.bf16.msra.mxu0 %v375
    %416 = vmatprep.subr.bf16.mxu0 0
    %417 = vmatpush1.bf16.msra.mxu0 %v376
    %418 = vmatprep.subr.bf16.mxu0 0
    %419 = vmatpush1.bf16.msra.mxu0 %v377
    %420 = vmatprep.subr.bf16.mxu0 0
    %421 = vmatpush1.bf16.msra.mxu0 %v378
    %422 = vmatprep.subr.bf16.mxu0 0
    %423 = vmatpush1.bf16.msra.mxu0 %v379
    %424 = vmatprep.subr.bf16.mxu0 0
    %425 = vmatpush1.bf16.msra.mxu0 %v380
    %426 = vmatprep.subr.bf16.mxu0 0
    %427 = vmatpush1.bf16.msra.mxu0 %v381
    %428 = vmatprep.subr.bf16.mxu0 0
    %429 = vmatpush1.bf16.msra.mxu0 %v382
    %430 = vmatprep.subr.bf16.mxu0 0
    %431 = vmatpush1.bf16.msra.mxu0 %v383
    %432 = vmatprep.mubr.bf16.mxu0 %v264
    %433 = vmatmul.mubr.bf16.gmra.mrb[0].mxu0 %v263
    %v434 = vpop.f32.mrb[0].mxu0
    %v435 = vadd.f32 %v302, %v434
    %v436 = vpop.f32.mrb[0].mxu0
    %v437 = vpop.f32.mrb[0].mxu0
    %v438 = vadd.f32 %v302, %v437
    %v439 = vpop.f32.mrb[0].mxu0
    %440 = vdwg.mxu0
    %v441 = vmax.f32 %v435, 0.0
    %v442 = vmax.f32 %v438, 0.0
    %v443 = vpack.c.bf16 %v442, %v441
    %v444 = vpack.c.bf16 %v262, %v259
    %v445 = vld [vmem:[#allocation8] sm:$0xf]
    %v446 = vld [vmem:[#allocation8 + $0x4] sm:$0xf]
    %v447 = vld [vmem:[#allocation8 + $0x8] sm:$0xf]
    %v448 = vld [vmem:[#allocation8 + $0xc] sm:$0xf]
    %v449 = vld [vmem:[#allocation8 + $0x10] sm:$0xf]
    %v450 = vld [vmem:[#allocation8 + $0x14] sm:$0xf]
    %v451 = vld [vmem:[#allocation8 + $0x18] sm:$0xf]
    %v452 = vld [vmem:[#allocation8 + $0x1c] sm:$0xf]
    %v453 = vld [vmem:[#allocation8 + $0x20] sm:$0xf]
    %v454 = vld [vmem:[#allocation8 + $0x24] sm:$0xf]
    %v455 = vld [vmem:[#allocation8 + $0x28] sm:$0xf]
    %v456 = vld [vmem:[#allocation8 + $0x2c] sm:$0xf]
    %v457 = vld [vmem:[#allocation8 + $0x30] sm:$0xf]
    %v458 = vld [vmem:[#allocation8 + $0x34] sm:$0xf]
    %v459 = vld [vmem:[#allocation8 + $0x38] sm:$0xf]
    %v460 = vld [vmem:[#allocation8 + $0x3c] sm:$0xf]
    %v461 = vld [vmem:[#allocation8 + $0x40] sm:$0xf]
    %v462 = vld [vmem:[#allocation8 + $0x44] sm:$0xf]
    %v463 = vld [vmem:[#allocation8 + $0x48] sm:$0xf]
    %v464 = vld [vmem:[#allocation8 + $0x4c] sm:$0xf]
    %v465 = vld [vmem:[#allocation8 + $0x50] sm:$0xf]
    %v466 = vld [vmem:[#allocation8 + $0x54] sm:$0xf]
    %v467 = vld [vmem:[#allocation8 + $0x58] sm:$0xf]
    %v468 = vld [vmem:[#allocation8 + $0x5c] sm:$0xf]
    %v469 = vld [vmem:[#allocation8 + $0x60] sm:$0xf]
    %v470 = vld [vmem:[#allocation8 + $0x64] sm:$0xf]
    %v471 = vld [vmem:[#allocation8 + $0x68] sm:$0xf]
    %v472 = vld [vmem:[#allocation8 + $0x6c] sm:$0xf]
    %v473 = vld [vmem:[#allocation8 + $0x70] sm:$0xf]
    %v474 = vld [vmem:[#allocation8 + $0x74] sm:$0xf]
    %v475 = vld [vmem:[#allocation8 + $0x78] sm:$0xf]
    %v476 = vld [vmem:[#allocation8 + $0x7c] sm:$0xf]
    %v477 = vld [vmem:[%s6] sm:$0x1]
    %v479 = vlaneseq
    %v480 = vshrl.u32 %v479, 7
    %v481 = vsub.s32 0, %v480
    %v482 = vrot.slane %v477, %v481
    %v516 = vunpack.c.l.b16 %v445
    %v517 = vunpack.c.l.b16 %v446
    %v518 = vunpack.c.l.b16 %v447
    %v519 = vunpack.c.l.b16 %v448
    %v520 = vunpack.c.l.b16 %v449
    %v521 = vunpack.c.l.b16 %v450
    %v522 = vunpack.c.l.b16 %v451
    %v523 = vunpack.c.l.b16 %v452
    %v524 = vunpack.c.l.b16 %v453
    %v525 = vunpack.c.l.b16 %v454
    %v526 = vunpack.c.l.b16 %v455
    %v527 = vunpack.c.l.b16 %v456
    %v528 = vunpack.c.l.b16 %v457
    %v529 = vunpack.c.l.b16 %v458
    %v530 = vunpack.c.l.b16 %v459
    %v531 = vunpack.c.l.b16 %v460
    %v532 = vunpack.c.l.b16 %v461
    %v533 = vunpack.c.l.b16 %v462
    %v534 = vunpack.c.l.b16 %v463
    %v535 = vunpack.c.l.b16 %v464
    %v536 = vunpack.c.l.b16 %v465
    %v537 = vunpack.c.l.b16 %v466
    %v538 = vunpack.c.l.b16 %v467
    %v539 = vunpack.c.l.b16 %v468
    %v540 = vunpack.c.l.b16 %v469
    %v541 = vunpack.c.l.b16 %v470
    %v542 = vunpack.c.l.b16 %v471
    %v543 = vunpack.c.l.b16 %v472
    %v544 = vunpack.c.l.b16 %v473
    %v545 = vunpack.c.l.b16 %v474
    %v546 = vunpack.c.l.b16 %v475
    %v547 = vunpack.c.l.b16 %v476
    %v548 = vpack.c.b16 %v517, %v516
    %v549 = vpack.c.b16 %v519, %v518
    %v550 = vpack.c.b16 %v521, %v520
    %v551 = vpack.c.b16 %v523, %v522
    %v552 = vpack.c.b16 %v525, %v524
    %v553 = vpack.c.b16 %v527, %v526
    %v554 = vpack.c.b16 %v529, %v528
    %v555 = vpack.c.b16 %v531, %v530
    %v556 = vpack.c.b16 %v533, %v532
    %v557 = vpack.c.b16 %v535, %v534
    %v558 = vpack.c.b16 %v537, %v536
    %v559 = vpack.c.b16 %v539, %v538
    %v560 = vpack.c.b16 %v541, %v540
    %v561 = vpack.c.b16 %v543, %v542
    %v562 = vpack.c.b16 %v545, %v544
    %v563 = vpack.c.b16 %v547, %v546
    %580 = vmatprep.subr.bf16.mxu0 0
    %581 = vmatpush1.bf16.msra.mxu0 %v548
    %582 = vmatprep.subr.bf16.mxu0 0
    %583 = vmatpush1.bf16.msra.mxu0 %v549
    %584 = vmatprep.subr.bf16.mxu0 0
    %585 = vmatpush1.bf16.msra.mxu0 %v550
    %586 = vmatprep.subr.bf16.mxu0 0
    %587 = vmatpush1.bf16.msra.mxu0 %v551
    %588 = vmatprep.subr.bf16.mxu0 0
    %589 = vmatpush1.bf16.msra.mxu0 %v552
    %590 = vmatprep.subr.bf16.mxu0 0
    %591 = vmatpush1.bf16.msra.mxu0 %v553
    %592 = vmatprep.subr.bf16.mxu0 0
    %593 = vmatpush1.bf16.msra.mxu0 %v554
    %594 = vmatprep.subr.bf16.mxu0 0
    %595 = vmatpush1.bf16.msra.mxu0 %v555
    %596 = vmatprep.subr.bf16.mxu0 0
    %597 = vmatpush1.bf16.msra.mxu0 %v556
    %598 = vmatprep.subr.bf16.mxu0 0
    %599 = vmatpush1.bf16.msra.mxu0 %v557
    %600 = vmatprep.subr.bf16.mxu0 0
    %601 = vmatpush1.bf16.msra.mxu0 %v558
    %602 = vmatprep.subr.bf16.mxu0 0
    %603 = vmatpush1.bf16.msra.mxu0 %v559
    %604 = vmatprep.subr.bf16.mxu0 0
    %605 = vmatpush1.bf16.msra.mxu0 %v560
    %606 = vmatprep.subr.bf16.mxu0 0
    %607 = vmatpush1.bf16.msra.mxu0 %v561
    %608 = vmatprep.subr.bf16.mxu0 0
    %609 = vmatpush1.bf16.msra.mxu0 %v562
    %610 = vmatprep.subr.bf16.mxu0 0
    %611 = vmatpush1.bf16.msra.mxu0 %v563
    %612 = vmatprep.mubr.bf16.mxu0 %v444
    %613 = vmatmul.mubr.bf16.gmra.mrb[0].mxu0 %v443
    %v614 = vpop.f32.mrb[0].mxu0
    %v615 = vadd.f32 %v482, %v614
    %v616 = vpop.f32.mrb[0].mxu0
    %v617 = vpop.f32.mrb[0].mxu0
    %v618 = vadd.f32 %v482, %v617
    %v619 = vpop.f32.mrb[0].mxu0
    %620 = vdwg.mxu0
    %v621 = vmax.f32 %v615, 0.0
    %v622 = vmax.f32 %v618, 0.0
    %v623 = vld [vmem:[%s7] sm:$0x1]
    %v624 = vunpack.c.l.bf16 %v623
    %v625 = vlaneseq
    %v626 = vshrl.u32 %v625, 7
    %v627 = vsub.s32 0, %v626
    %v628 = vrot.slane %v624, %v627
    %v629 = vmul.f32 %v621, %v628
    %v630 = vmul.f32 %v622, %v628
    %631 = vadd.xlane.f32.xlu0 %v629
    %v632 = vpop.xlane.xlu0 %631
    %633 = vadd.xlane.f32.xlu0 %v630
    %v634 = vpop.xlane.xlu0 %633
    %s635 = sld [smem:[#allocation2]]
    %v636 = vstv %s635
    %v637 = vadd.f32 %v632, %v636
    %v638 = vadd.f32 %v634, %v636
    %vm639 = vcmask 7168
    %640 = vst.msk [vmem:[%s9] sm:$0xff] %vm639, %v637
    %641 = vst.msk [vmem:[%s9 + $0x8] sm:$0xff] %vm639, %v638
    // Predicated region
    $region54: #{tpu_custom_call.1} parent=1 // pred_check
      _
    $region55: #{tpu_custom_call.1} parent=1 // pred_check_branch
      %643 = sbr.rel (0) target = $region57
    $region56: #{tpu_custom_call.1} parent=1 // pred_region
      _
    $region57: #{tpu_custom_call.1} parent=1 // pred_fallthru
      _
    // Predicated region
    $region58: #{tpu_custom_call.1} parent=1 // pred_check
      _
    $region59: #{tpu_custom_call.1} parent=1 // pred_check_branch
      %645 = sbr.rel (0) target = $region61
    $region60: #{tpu_custom_call.1} parent=1 // pred_region
      _
    $region61: #{tpu_custom_call.1} parent=1 // pred_fallthru
      _
    %646 = vsyncpa [#allocation4], 1
    %647 = vsyncpa [#allocation6], 1
    %648 = vsyncpa [#allocation9], 1

</llo_original>
